<compile_context>
chip_gen: v5e
topology: v5e:2x2
jax: 0.10.0
libtpu: 0.0.40
codegen_flags: <defaults>
</compile_context>

<pallas_src>
import math

import jax
import jax.numpy as jnp
from jax.experimental import pallas as pl
from jax.experimental.pallas import tpu as pltpu


# ---------------------------------------------------------------------------
# Buffer setup (matches PositionalEncoding.__init__ exactly)
# ---------------------------------------------------------------------------
def make_pe_buffer(d_model: int, max_len: int = 5000, dtype=jnp.float32):
    """Builds the (max_len, 1, d_model) positional-encoding buffer
    (same layout as the PyTorch module's registered buffer)."""
    position = jnp.arange(0, max_len, dtype=jnp.float32)[:, None]          # (max_len, 1)
    div_term = jnp.exp(
        jnp.arange(0, d_model, 2, dtype=jnp.float32) * (-math.log(10000.0) / d_model)
    )                                                                       # (d_model//2,)
    pe = jnp.zeros((max_len, d_model), dtype=jnp.float32)
    pe = pe.at[:, 0::2].set(jnp.sin(position * div_term))
    pe = pe.at[:, 1::2].set(jnp.cos(position * div_term))
    # unsqueeze(0).transpose(0, 1)  ->  (max_len, 1, d_model)
    return pe[:, None, :].astype(dtype)


# ---------------------------------------------------------------------------
# Pallas kernel: broadcast elementwise add  x_tile + pe_tile
# ---------------------------------------------------------------------------
def _add_pe_kernel(x_ref, pe_ref, o_ref):
    # x_ref: (TS, B, D), pe_ref: (TS, D).  Cast only this tile (no-op when
    # dtypes already match) and broadcast over the batch axis.
    pe = pe_ref[...].astype(x_ref.dtype)
    o_ref[...] = x_ref[...] + pe[:, None, :]


def _pick_seq_tile(S: int, B: int, D: int, itemsize: int,
                   target_tile_bytes: int = 4 * 1024 * 1024) -> int:
    """Seq tile so that the x-tile is ~target bytes, the pe block's sublane
    dim (ts) is 8-aligned, the tile divides S when possible, and the grid has
    at least 2 steps (v7x megacore) whenever there is enough work."""
    if S < 16:
        return S                                  # tiny: one dense block
    rows = max(8, target_tile_bytes // max(1, B * D * itemsize))
    rows = min(rows, pl.cdiv(S, 2))               # guarantee >= 2 grid steps
    rows = max(8, (rows // 8) * 8)                # 8-aligned pe sublane dim
    if S % rows != 0:                             # prefer no ragged final tile
        for cand in range(rows, 7, -8):
            if S % cand == 0:
                rows = cand
                break
    return min(rows, S)


def positional_encoding(x: jnp.ndarray, pe: jnp.ndarray,
                        *, seq_tile: int | None = None,
                        donate_x: bool = False) -> jnp.ndarray:
    """x: (seq_len, batch, d_model); pe: (max_len, 1, d_model) or (max_len, d_model)."""
    S, B, D = x.shape
    if pe.ndim == 3:
        # Drop the singleton batch dim (free metadata reshape) so the pe
        # block is sublane-dense in VMEM and its DMA is contiguous.
        pe = pe.reshape(pe.shape[0], pe.shape[2])
    assert pe.ndim == 2 and pe.shape[0] >= S and pe.shape[1] == D

    ts = seq_tile if seq_tile is not None else _pick_seq_tile(S, B, D, x.dtype.itemsize)
    ts = max(1, min(ts, S))
    grid = (pl.cdiv(S, ts),)

    extra = {}
    if donate_x:
        # Reuses x's HBM buffer for the output (caller must not reuse x).
        extra["input_output_aliases"] = {0: 0}

    return pl.pallas_call(
        _add_pe_kernel,
        out_shape=jax.ShapeDtypeStruct((S, B, D), x.dtype),
        grid=grid,
        in_specs=[
            pl.BlockSpec((ts, B, D), lambda s: (s, 0, 0)),   # x: tile the seq axis
            pl.BlockSpec((ts, D), lambda s: (s, 0)),         # pe: dense 2-D tile
        ],
        out_specs=pl.BlockSpec((ts, B, D), lambda s: (s, 0, 0)),
        compiler_params=pltpu.CompilerParams(
            dimension_semantics=("parallel",),               # megacore sharding on v7x
            vmem_limit_bytes=32 * 1024 * 1024,               # safe on v5e/v6e/v7x
        ),
        **extra,
    )(x, pe)


# ---------------------------------------------------------------------------
# Demo / self-test
# ---------------------------------------------------------------------------
if __name__ == "__main__":
    key = jax.random.PRNGKey(0)

    # 1) Small shape consistent with the module (seq=8, batch=2, d_model=32).
    seq_len, batch, d_model = 8, 2, 32
    pe = make_pe_buffer(d_model, max_len=64)
    x = jax.random.normal(key, (seq_len, batch, d_model), dtype=jnp.float32)

    out = jax.block_until_ready(positional_encoding(x, pe))
    ref = x + pe[:seq_len].astype(x.dtype)
    assert out.shape == (seq_len, batch, d_model)
    assert jnp.allclose(out, ref, atol=1e-6), "mismatch vs reference (single-block path)"

    # 2) Exercise the tiled / pipelined path (grid > 1, lane/sublane-dense blocks).
    seq_len2, batch2, d_model2 = 64, 8, 128
    pe2 = make_pe_buffer(d_model2, max_len=128)
    x2 = jax.random.normal(jax.random.PRNGKey(1), (seq_len2, batch2, d_model2),
                           dtype=jnp.float32)
    out2 = jax.block_until_ready(positional_encoding(x2, pe2, seq_tile=16))
    ref2 = x2 + pe2[:seq_len2].astype(x2.dtype)
    assert jnp.allclose(out2, ref2, atol=1e-6), "mismatch vs reference (tiled path)"

    # 3) Auto tile pick (should give >= 2 grid steps here) + donated output.
    out3 = jax.block_until_ready(positional_encoding(x2, pe2, donate_x=True))
    assert jnp.allclose(out3, ref2, atol=1e-6), "mismatch vs reference (auto-tile path)"

    print("KERNEL_OK")
</pallas_src>

<mosaic_0001>
module attributes {stable_mosaic.version = 11 : i64} {
  func.func @_add_pe_kernel(%arg0: i32, %arg1: memref<8x2x32xf32, #tpu.memory_space<vmem>>, %arg2: memref<8x32xf32, #tpu.memory_space<vmem>>, %arg3: memref<8x2x32xf32, #tpu.memory_space<vmem>>) attributes {dimension_semantics = [#tpu.dimension_semantics<parallel>], iteration_bounds = array<i64: 1>, scalar_prefetch = 0 : i64, scratch_operands = 0 : i64, tpu.core_type = #tpu.core_type<tc>, window_params = [{transform_indices = @transform_0, window_bounds = array<i64: 8, 2, 32>}, {transform_indices = @transform_1, window_bounds = array<i64: 8, 32>}, {transform_indices = @transform_2, window_bounds = array<i64: 8, 2, 32>}]} {
    %c0 = arith.constant 0 : index
    %c0_0 = arith.constant 0 : index
    %0 = vector.load %arg2[%c0, %c0_0] : memref<8x32xf32, #tpu.memory_space<vmem>>, vector<8x32xf32>
    %c0_1 = arith.constant 0 : index
    %c0_2 = arith.constant 0 : index
    %c0_3 = arith.constant 0 : index
    %1 = vector.load %arg1[%c0_1, %c0_2, %c0_3] : memref<8x2x32xf32, #tpu.memory_space<vmem>>, vector<8x2x32xf32>
    %2 = vector.shape_cast %0 : vector<8x32xf32> to vector<8x1x32xf32>
    %3 = vector.broadcast %2 : vector<8x1x32xf32> to vector<8x2x32xf32>
    %4 = arith.addf %1, %3 : vector<8x2x32xf32>
    %c0_4 = arith.constant 0 : index
    %c0_5 = arith.constant 0 : index
    %c0_6 = arith.constant 0 : index
    %5 = vector.load %arg3[%c0_4, %c0_5, %c0_6] : memref<8x2x32xf32, #tpu.memory_space<vmem>>, vector<8x2x32xf32>
    tpu.vector_store %arg3[%c0_4, %c0_5, %c0_6], %4 {strides = array<i32>} : memref<8x2x32xf32, #tpu.memory_space<vmem>>, vector<8x2x32xf32>,
    return
  }
  func.func @transform_0(%arg0: i32) -> (i32, i32, i32) {
    %c0_i32 = arith.constant 0 : i32
    %c0_i32_0 = arith.constant 0 : i32
    %c0_i32_1 = arith.constant 0 : i32
    return %arg0, %c0_i32, %c0_i32_0 : i32, i32, i32
  }
  func.func @transform_1(%arg0: i32) -> (i32, i32) {
    %c0_i32 = arith.constant 0 : i32
    %c0_i32_0 = arith.constant 0 : i32
    return %arg0, %c0_i32 : i32, i32
  }
  func.func @transform_2(%arg0: i32) -> (i32, i32, i32) {
    %c0_i32 = arith.constant 0 : i32
    %c0_i32_0 = arith.constant 0 : i32
    %c0_i32_1 = arith.constant 0 : i32
    return %arg0, %c0_i32, %c0_i32_0 : i32, i32, i32
  }
}

</mosaic_0001>

<llo_original>
// kernel: tpu_custom_call.1
$region0: #{tpu_custom_call.1}
  #allocation0 [shape = 'u32[]', space=smem, size = 0x4, offset = 0x4, fixed_abs, tag = 'smem constant byte address 0x4 - core index']
  #allocation1 [shape = 'u32[72,128]{1,0:T(1,128)}', space=vmem, size = 0x9000, scoped, tag = 'internal scratch']
  %s0 = inlined_call_operand.vmem [shape: f32[8,2,32], index: 0, kind: input, shape index: {}]
  %s1 = inlined_call_operand.vmem [shape: f32[64,32], index: 1, kind: input, shape index: {}]
  %s2 = inlined_call_operand.hbm [shape: f32[8,2,32], index: 2, kind: output, shape index: {}]
  %s3 = sld [smem:[#allocation0]]
  $region18: #{tpu_custom_call.1} parent=0
    _
  %s5 = ssub.s32 1, %s3
  %s6 = scalar_select 0, %s5, %s3
  $region1: #{tpu_custom_call.1} parent=0
    #allocation2 [shape = 'u8[8192]{0}', space=vmem, size = 0x2000, scoped, tag = 'output window, operand 0, single buffered']
    #allocation3 [shape = 's32[1]{0}', space=sflag, size = 0x4, scoped, tag = 'scoped memory for tpu_custom_call.1']
    %7 = vsyncpa [#allocation3], 0
    // Predicated region
    $region2: #{tpu_custom_call.1} parent=1 // pred_check
      _
    $region3: #{tpu_custom_call.1} parent=1 // pred_check_branch
      %9 = sbr.rel (0) target = $region5
    $region4: #{tpu_custom_call.1} parent=1 // pred_region
      _
    $region5: #{tpu_custom_call.1} parent=1 // pred_fallthru
      _
    // Predicated region
    $region6: #{tpu_custom_call.1} parent=1 // pred_check
      _
    $region7: #{tpu_custom_call.1} parent=1 // pred_check_branch
      %11 = sbr.rel (0) target = $region9
    $region8: #{tpu_custom_call.1} parent=1 // pred_region
      _
    $region9: #{tpu_custom_call.1} parent=1 // pred_fallthru
      _
    %v12 = vld [vmem:[%s1] sm:$0xff]
    %v13 = vld [vmem:[%s0] sm:$0x3]
    %v14 = vld [vmem:[%s0 + $0x2] sm:$0x3]
    %v15 = vld [vmem:[%s0 + $0x4] sm:$0x3]
    %v16 = vld [vmem:[%s0 + $0x6] sm:$0x3]
    %v17 = vld [vmem:[%s0 + $0x8] sm:$0x3]
    %v18 = vld [vmem:[%s0 + $0xa] sm:$0x3]
    %v19 = vld [vmem:[%s0 + $0xc] sm:$0x3]
    %v20 = vld [vmem:[%s0 + $0xe] sm:$0x3]
    %v22 = vrot.slane %v12, 1
    %v23 = vrot.slane %v12, 2
    %v24 = vrot.slane %v12, 3
    %v25 = vrot.slane %v12, 4
    %v26 = vrot.slane %v12, 5
    %v27 = vrot.slane %v12, 6
    %v28 = vrot.slane %v12, 7
    %v29 = vperm.slane %v12, 0
    %v30 = vperm.slane %v22, 0
    %v31 = vperm.slane %v23, 0
    %v32 = vperm.slane %v24, 0
    %v33 = vperm.slane %v25, 0
    %v34 = vperm.slane %v26, 0
    %v35 = vperm.slane %v27, 0
    %v36 = vperm.slane %v28, 0
    %v45 = vadd.f32 %v13, %v29
    %v46 = vadd.f32 %v14, %v30
    %v47 = vadd.f32 %v15, %v31
    %v48 = vadd.f32 %v16, %v32
    %v49 = vadd.f32 %v17, %v33
    %v50 = vadd.f32 %v18, %v34
    %v51 = vadd.f32 %v19, %v35
    %v52 = vadd.f32 %v20, %v36
    %vm53 = vcmask 254976
    %54 = vst.msk [vmem:[#allocation2] sm:$0x3] %vm53, %v45
    %55 = vst.msk [vmem:[#allocation2 + $0x2] sm:$0x3] %vm53, %v46
    %56 = vst.msk [vmem:[#allocation2 + $0x4] sm:$0x3] %vm53, %v47
    %57 = vst.msk [vmem:[#allocation2 + $0x6] sm:$0x3] %vm53, %v48
    %58 = vst.msk [vmem:[#allocation2 + $0x8] sm:$0x3] %vm53, %v49
    %59 = vst.msk [vmem:[#allocation2 + $0xa] sm:$0x3] %vm53, %v50
    %60 = vst.msk [vmem:[#allocation2 + $0xc] sm:$0x3] %vm53, %v51
    %61 = vst.msk [vmem:[#allocation2 + $0xe] sm:$0x3] %vm53, %v52
    // Predicated region
    $region10: #{tpu_custom_call.1} parent=1 // pred_check
      _
    $region11: #{tpu_custom_call.1} parent=1 // pred_check_branch
      %63 = sbr.rel (0) target = $region13
    $region12: #{tpu_custom_call.1} parent=1 // pred_region
      %65 = vsyncadd [#allocation3], 0
      %s66 = sshll.u32 [#allocation2], 4
      %s67 = int_to_ptr.vmem [resolvable:$true] %s66
      %s68 = sshll.u32 %s2, 4
      %s69 = int_to_ptr.hbm [resolvable:$true] %s68
      %74 = dma.vmem_to_hbm [thread:$0]  %s67, 256, %s69, [#allocation3], 32, 32, 2
    $region13: #{tpu_custom_call.1} parent=1 // pred_fallthru
      _
    // Predicated region
    $region14: #{tpu_custom_call.1} parent=1 // pred_check
      _
    $region15: #{tpu_custom_call.1} parent=1 // pred_check_branch
      %76 = sbr.rel (0) target = $region17
    $region16: #{tpu_custom_call.1} parent=1 // pred_region
      %78 = dma.done [#allocation3], 256
    $region17: #{tpu_custom_call.1} parent=1 // pred_fallthru
      _
    %79 = vsyncpa [#allocation3], 1

</llo_original>
